<compile_context>
chip_gen: v5e
topology: v5e:2x2
jax: 0.10.0
libtpu: 0.0.40
codegen_flags: <defaults>
</compile_context>

<pallas_src>
import jax
import jax.numpy as jnp
from jax.experimental import pallas as pl
from jax.experimental.pallas import tpu as pltpu


def _round_up(n, m):
    return ((n + m - 1) // m) * m


def mlp_kernel(x_ref, w1_ref, b1_ref, w2_ref, b2_ref, w3_ref, b3_ref, o_ref):
    # Layer 1: Linear(D -> H) + ReLU.  x is cast to bf16 in-kernel (VPU) so
    # HBM is read only once in the caller's dtype; MXU accumulates in f32.
    xb = x_ref[...].astype(jnp.bfloat16)
    h1 = jnp.dot(xb, w1_ref[...], preferred_element_type=jnp.float32)
    h1 = jnp.maximum(h1 + b1_ref[...], 0.0)                       # [tb, H]  f32

    # Dropout(p=0.2) is identity in eval mode.
    # TODO(synk): training-mode dropout via pltpu.prng_seed / prng_random_bits.

    # Layer 2: Linear(H -> H//2) + ReLU, bf16 x bf16 -> f32 accumulate.
    h2 = jnp.dot(h1.astype(jnp.bfloat16), w2_ref[...],
                 preferred_element_type=jnp.float32)
    h2 = jnp.maximum(h2 + b2_ref[...], 0.0)                       # [tb, H2] f32

    # Layer 3: Linear(H//2 -> 1) + Sigmoid, produced lane-dense as [1, tb]:
    #   logits_row = w3_row @ h2^T  (contract the feature axis of both).
    logits = jax.lax.dot_general(
        w3_ref[...], h2.astype(jnp.bfloat16), (((1,), (1,)), ((), ())),
        preferred_element_type=jnp.float32)                       # [1, tb]
    logits = logits + b3_ref[0]                                   # SMEM f32 scalar
    o_ref[...] = jax.nn.sigmoid(logits).astype(o_ref.dtype)


def _pick_batch_tile(B, D, H, H2, x_itemsize, budget_bytes, tb_cap=2048):
    """Largest 128-multiple tile (<= tb_cap) whose pipeline fits the VMEM budget."""

    def vmem_usage(tb):
        x_tile = 2 * tb * D * x_itemsize                # double-buffered x tile
        out_tile = 2 * tb * 4                           # double-buffered [1, tb] f32 row
        acts = 2 * tb * (H + H2) * 4                    # h1/h2 f32 temporaries (headroom)
        weights = 2 * ((D * H + H * H2 + H2) * 2 +      # bf16 w1/w2/w3 (worst-case 2 bufs)
                       (H + H2) * 4)                    # f32 b1/b2
        return x_tile + out_tile + acts + weights

    tb = tb_cap
    while tb > 128 and vmem_usage(tb) > budget_bytes:
        tb -= 128
    # Never larger than the (lane-padded) batch.
    tb = min(tb, _round_up(B, 128))
    # v7x megacore: prefer >= 2 batch tiles when the batch spans more than one
    # 128-lane tile (costs one extra ~0.35us grid step on single-core chips).
    if B > 128 and pl.cdiv(B, tb) == 1:
        tb = max(128, _round_up(pl.cdiv(B, 2), 128))
    # Single-tile case: make the block exactly the array -> no padded rows or
    # lanes anywhere (block dims equal to the full array dims are always legal).
    if pl.cdiv(B, tb) == 1:
        tb = B
    return tb


def mlp_forward(x, params, *, tb=None, vmem_budget_bytes=24 * 1024 * 1024):
    """x: [B, D] (f32 or bf16).  params: dict from init_params.
    Returns sigmoid probabilities of shape [B, 1], float32."""
    B, D = x.shape
    H = params["w1"].shape[1]
    H2 = params["w2"].shape[1]

    if tb is None:
        tb = _pick_batch_tile(B, D, H, H2, x.dtype.itemsize, vmem_budget_bytes)
    else:
        tb = max(128, _round_up(tb, 128))
        tb = min(tb, _round_up(B, 128))

    grid_b = pl.cdiv(B, tb)
    b_out = grid_b * tb          # lane-padded output row (output-only padding)

    def run(weight_pipeline_mode):
        kw = {} if weight_pipeline_mode is None else {"pipeline_mode": weight_pipeline_mode}
        return pl.pallas_call(
            mlp_kernel,
            out_shape=jax.ShapeDtypeStruct((1, b_out), jnp.float32),
            grid_spec=pltpu.PrefetchScalarGridSpec(
                num_scalar_prefetch=0,
                grid=(grid_b,),
                in_specs=[
                    pl.BlockSpec((tb, D), lambda i: (i, 0)),           # x tile (partial tail OK)
                    pl.BlockSpec((D, H), lambda i: (0, 0), **kw),      # w1 (resident, bf16)
                    pl.BlockSpec((1, H), lambda i: (0, 0), **kw),      # b1 (f32)
                    pl.BlockSpec((H, H2), lambda i: (0, 0), **kw),     # w2 (bf16)
                    pl.BlockSpec((1, H2), lambda i: (0, 0), **kw),     # b2 (f32)
                    pl.BlockSpec((1, H2), lambda i: (0, 0), **kw),     # w3 row (bf16)
                    pl.BlockSpec(memory_space=pltpu.MemorySpace.SMEM),  # b3 scalar
                ],
                out_specs=pl.BlockSpec((1, tb), lambda i: (0, i)),     # lane-dense row
            ),
            compiler_params=pltpu.CompilerParams(
                dimension_semantics=("parallel",),
                vmem_limit_bytes=32 * 1024 * 1024,   # > v5e's 16 MiB scoped default
            ),
        )(x, params["w1"], params["b1"], params["w2"], params["b2"],
          params["w3"], params["b3"])

    try:
        # Single-buffer the never-changing weight/bias blocks.
        out_row = run(pl.Buffered(1))
    except Exception:
        # Fallback for jax versions without pipeline_mode support.
        out_row = run(None)

    # [1, b_out] lane-dense row  ->  [B, 1] column expected by the caller.
    return out_row[0, :B].reshape(B, 1)


def init_params(key, input_dim, hidden_dim=32):
    """torch.nn.Linear-style init; w1/w2 stored transposed to [in, out].
    Weight matrices are stored bf16 (MXU-native, half the HBM/VMEM traffic);
    biases stay f32."""
    h2 = hidden_dim // 2
    k = jax.random.split(key, 6)

    def lin(kw, kb, fan_in, fan_out):
        bound = 1.0 / jnp.sqrt(fan_in)
        w = jax.random.uniform(kw, (fan_in, fan_out), jnp.float32, -bound, bound)
        b = jax.random.uniform(kb, (fan_out,), jnp.float32, -bound, bound)
        return w, b

    w1, b1 = lin(k[0], k[1], input_dim, hidden_dim)
    w2, b2 = lin(k[2], k[3], hidden_dim, h2)
    w3, b3 = lin(k[4], k[5], h2, 1)
    return {
        "w1": w1.astype(jnp.bfloat16),        # [D, H]   bf16
        "b1": b1.reshape(1, hidden_dim),      # [1, H]   f32
        "w2": w2.astype(jnp.bfloat16),        # [H, H2]  bf16
        "b2": b2.reshape(1, h2),              # [1, H2]  f32
        "w3": w3.T.astype(jnp.bfloat16),      # [1, H2]  bf16 (torch row layout)
        "b3": b3.reshape(1),                  # [1]      f32 (SMEM scalar)
    }


def mlp_reference(x, p):
    """Pure-JAX reference with the same bf16 rounding as the kernel."""
    f32 = jnp.float32
    xb = x.astype(jnp.bfloat16)
    h1 = jax.nn.relu(jnp.dot(xb, p["w1"], preferred_element_type=f32) + p["b1"])
    h2 = jax.nn.relu(jnp.dot(h1.astype(jnp.bfloat16), p["w2"],
                             preferred_element_type=f32) + p["b2"])
    logits = jnp.dot(h2.astype(jnp.bfloat16), p["w3"].T,
                     preferred_element_type=f32) + p["b3"][0]
    return jax.nn.sigmoid(logits)


if __name__ == "__main__":
    key = jax.random.PRNGKey(0)
    kx, kp = jax.random.split(key)

    batch, input_dim, hidden_dim = 8, 32, 32
    x = jax.random.normal(kx, (batch, input_dim), jnp.float32)
    params = init_params(kp, input_dim, hidden_dim)

    out = jax.block_until_ready(mlp_forward(x, params))

    ref = mlp_reference(x, params)
    assert out.shape == (batch, 1)
    assert jnp.allclose(out, ref, atol=2e-3, rtol=2e-3), \
        float(jnp.max(jnp.abs(out - ref)))

    print("KERNEL_OK")
</pallas_src>

<mosaic_0001>
module attributes {stable_mosaic.version = 11 : i64} {
  func.func @mlp_kernel(%arg0: i32, %arg1: memref<8x32xf32, #tpu.memory_space<vmem>>, %arg2: memref<32x32xbf16, #tpu.memory_space<vmem>>, %arg3: memref<1x32xf32, #tpu.memory_space<vmem>>, %arg4: memref<32x16xbf16, #tpu.memory_space<vmem>>, %arg5: memref<1x16xf32, #tpu.memory_space<vmem>>, %arg6: memref<1x16xbf16, #tpu.memory_space<vmem>>, %arg7: memref<1xf32, #tpu.memory_space<smem>>, %arg8: memref<1x8xf32, #tpu.memory_space<vmem>>) attributes {dimension_semantics = [#tpu.dimension_semantics<parallel>], iteration_bounds = array<i64: 1>, scalar_prefetch = 0 : i64, scratch_operands = 0 : i64, tpu.core_type = #tpu.core_type<tc>, window_params = [{transform_indices = @transform_0, window_bounds = array<i64: 8, 32>}, {pipeline_mode = #tpu.pipeline_mode<synchronous>, transform_indices = @transform_1, window_bounds = array<i64: 32, 32>}, {pipeline_mode = #tpu.pipeline_mode<synchronous>, transform_indices = @transform_2, window_bounds = array<i64: 1, 32>}, {pipeline_mode = #tpu.pipeline_mode<synchronous>, transform_indices = @transform_3, window_bounds = array<i64: 32, 16>}, {pipeline_mode = #tpu.pipeline_mode<synchronous>, transform_indices = @transform_4, window_bounds = array<i64: 1, 16>}, {pipeline_mode = #tpu.pipeline_mode<synchronous>, transform_indices = @transform_5, window_bounds = array<i64: 1, 16>}, {transform_indices = @transform_6, window_bounds = array<i64: 1>}, {transform_indices = @transform_7, window_bounds = array<i64: 1, 8>}]} {
    %c0 = arith.constant 0 : index
    %c0_0 = arith.constant 0 : index
    %0 = vector.load %arg1[%c0, %c0_0] : memref<8x32xf32, #tpu.memory_space<vmem>>, vector<8x32xf32>
    %1 = arith.truncf %0 : vector<8x32xf32> to vector<8x32xbf16>
    %c0_1 = arith.constant 0 : index
    %c0_2 = arith.constant 0 : index
    %2 = vector.load %arg2[%c0_1, %c0_2] : memref<32x32xbf16, #tpu.memory_space<vmem>>, vector<32x32xbf16>
    %cst = arith.constant dense<0.000000e+00> : vector<8x32xf32>
    %3 = tpu.matmul %1, %2, %cst {dimension_numbers = #tpu.dot_dimension_numbers<[1], [0], [0], [1], [0, 0, 1, 1], [], []>} : vector<8x32xbf16>, vector<32x32xbf16>, vector<8x32xf32> -> vector<8x32xf32>
    %c0_3 = arith.constant 0 : index
    %c0_4 = arith.constant 0 : index
    %4 = vector.load %arg3[%c0_3, %c0_4] : memref<1x32xf32, #tpu.memory_space<vmem>>, vector<1x32xf32>
    %5 = vector.broadcast %4 : vector<1x32xf32> to vector<8x32xf32>
    %6 = arith.addf %3, %5 : vector<8x32xf32>
    %cst_5 = arith.constant 0.000000e+00 : f32
    %7 = vector.broadcast %cst_5 : f32 to vector<8x32xf32>
    %8 = arith.maximumf %6, %7 : vector<8x32xf32>
    %9 = arith.truncf %8 : vector<8x32xf32> to vector<8x32xbf16>
    %c0_6 = arith.constant 0 : index
    %c0_7 = arith.constant 0 : index
    %10 = vector.load %arg4[%c0_6, %c0_7] : memref<32x16xbf16, #tpu.memory_space<vmem>>, vector<32x16xbf16>
    %cst_8 = arith.constant dense<0.000000e+00> : vector<8x16xf32>
    %11 = tpu.matmul %9, %10, %cst_8 {dimension_numbers = #tpu.dot_dimension_numbers<[1], [0], [0], [1], [0, 0, 1, 1], [], []>} : vector<8x32xbf16>, vector<32x16xbf16>, vector<8x16xf32> -> vector<8x16xf32>
    %c0_9 = arith.constant 0 : index
    %c0_10 = arith.constant 0 : index
    %12 = vector.load %arg5[%c0_9, %c0_10] : memref<1x16xf32, #tpu.memory_space<vmem>>, vector<1x16xf32>
    %13 = vector.broadcast %12 : vector<1x16xf32> to vector<8x16xf32>
    %14 = arith.addf %11, %13 : vector<8x16xf32>
    %cst_11 = arith.constant 0.000000e+00 : f32
    %15 = vector.broadcast %cst_11 : f32 to vector<8x16xf32>
    %16 = arith.maximumf %14, %15 : vector<8x16xf32>
    %c0_12 = arith.constant 0 : index
    %c0_13 = arith.constant 0 : index
    %17 = vector.load %arg6[%c0_12, %c0_13] : memref<1x16xbf16, #tpu.memory_space<vmem>>, vector<1x16xbf16>
    %18 = arith.truncf %16 : vector<8x16xf32> to vector<8x16xbf16>
    %cst_14 = arith.constant dense<0.000000e+00> : vector<1x8xf32>
    %19 = tpu.matmul %17, %18, %cst_14 {dimension_numbers = #tpu.dot_dimension_numbers<[1], [1], [0], [0], [0, 0, 1, 0], [], []>} : vector<1x16xbf16>, vector<8x16xbf16>, vector<1x8xf32> -> vector<1x8xf32>
    %c0_15 = arith.constant 0 : index
    %20 = memref.load %arg7[%c0_15] : memref<1xf32, #tpu.memory_space<smem>>
    %21 = vector.broadcast %20 : f32 to vector<1x8xf32>
    %22 = arith.addf %19, %21 : vector<1x8xf32>
    %23 = arith.negf %22 : vector<1x8xf32>
    %24 = math.exp %23 : vector<1x8xf32>
    %cst_16 = arith.constant 1.000000e+00 : f32
    %25 = vector.broadcast %cst_16 : f32 to vector<1x8xf32>
    %26 = arith.addf %25, %24 : vector<1x8xf32>
    %27 = arith.divf %25, %26 : vector<1x8xf32>
    %c0_17 = arith.constant 0 : index
    %c0_18 = arith.constant 0 : index
    %28 = vector.load %arg8[%c0_17, %c0_18] : memref<1x8xf32, #tpu.memory_space<vmem>>, vector<1x8xf32>
    tpu.vector_store %arg8[%c0_17, %c0_18], %27 {strides = array<i32>} : memref<1x8xf32, #tpu.memory_space<vmem>>, vector<1x8xf32>,
    return
  }
  func.func @transform_0(%arg0: i32) -> (i32, i32) {
    %c0_i32 = arith.constant 0 : i32
    %c0_i32_0 = arith.constant 0 : i32
    return %arg0, %c0_i32 : i32, i32
  }
  func.func @transform_1(%arg0: i32) -> (i32, i32) {
    %c0_i32 = arith.constant 0 : i32
    %c0_i32_0 = arith.constant 0 : i32
    %c0_i32_1 = arith.constant 0 : i32
    return %c0_i32, %c0_i32_0 : i32, i32
  }
  func.func @transform_2(%arg0: i32) -> (i32, i32) {
    %c0_i32 = arith.constant 0 : i32
    %c0_i32_0 = arith.constant 0 : i32
    %c0_i32_1 = arith.constant 0 : i32
    return %c0_i32, %c0_i32_0 : i32, i32
  }
  func.func @transform_3(%arg0: i32) -> (i32, i32) {
    %c0_i32 = arith.constant 0 : i32
    %c0_i32_0 = arith.constant 0 : i32
    %c0_i32_1 = arith.constant 0 : i32
    return %c0_i32, %c0_i32_0 : i32, i32
  }
  func.func @transform_4(%arg0: i32) -> (i32, i32) {
    %c0_i32 = arith.constant 0 : i32
    %c0_i32_0 = arith.constant 0 : i32
    %c0_i32_1 = arith.constant 0 : i32
    return %c0_i32, %c0_i32_0 : i32, i32
  }
  func.func @transform_5(%arg0: i32) -> (i32, i32) {
    %c0_i32 = arith.constant 0 : i32
    %c0_i32_0 = arith.constant 0 : i32
    %c0_i32_1 = arith.constant 0 : i32
    return %c0_i32, %c0_i32_0 : i32, i32
  }
  func.func @transform_6(%arg0: i32) -> i32 {
    %c0_i32 = arith.constant 0 : i32
    %c0_i32_0 = arith.constant 0 : i32
    return %c0_i32 : i32
  }
  func.func @transform_7(%arg0: i32) -> (i32, i32) {
    %c0_i32 = arith.constant 0 : i32
    %c0_i32_0 = arith.constant 0 : i32
    return %c0_i32, %arg0 : i32, i32
  }
}

module attributes {stable_mosaic.version = 11 : i64} {
  func.func @mlp_kernel(%arg0: i32, %arg1: memref<8x32xf32, #tpu.memory_space<vmem>>, %arg2: memref<32x32xbf16, #tpu.memory_space<vmem>>, %arg3: memref<1x32xf32, #tpu.memory_space<vmem>>, %arg4: memref<32x16xbf16, #tpu.memory_space<vmem>>, %arg5: memref<1x16xf32, #tpu.memory_space<vmem>>, %arg6: memref<1x16xbf16, #tpu.memory_space<vmem>>, %arg7: memref<1xf32, #tpu.memory_space<smem>>, %arg8: memref<1x8xf32, #tpu.memory_space<vmem>>) attributes {dimension_semantics = [#tpu.dimension_semantics<parallel>], iteration_bounds = array<i64: 1>, scalar_prefetch = 0 : i64, scratch_operands = 0 : i64, tpu.core_type = #tpu.core_type<tc>, window_params = [{transform_indices = @transform_0, window_bounds = array<i64: 8, 32>}, {pipeline_mode = #tpu.pipeline_mode<synchronous>, transform_indices = @transform_1, window_bounds = array<i64: 32, 32>}, {pipeline_mode = #tpu.pipeline_mode<synchronous>, transform_indices = @transform_2, window_bounds = array<i64: 1, 32>}, {pipeline_mode = #tpu.pipeline_mode<synchronous>, transform_indices = @transform_3, window_bounds = array<i64: 32, 16>}, {pipeline_mode = #tpu.pipeline_mode<synchronous>, transform_indices = @transform_4, window_bounds = array<i64: 1, 16>}, {pipeline_mode = #tpu.pipeline_mode<synchronous>, transform_indices = @transform_5, window_bounds = array<i64: 1, 16>}, {transform_indices = @transform_6, window_bounds = array<i64: 1>}, {transform_indices = @transform_7, window_bounds = array<i64: 1, 8>}]} {
    %c0 = arith.constant 0 : index
    %c0_0 = arith.constant 0 : index
    %0 = vector.load %arg1[%c0, %c0_0] : memref<8x32xf32, #tpu.memory_space<vmem>>, vector<8x32xf32>
    %1 = arith.truncf %0 : vector<8x32xf32> to vector<8x32xbf16>
    %c0_1 = arith.constant 0 : index
    %c0_2 = arith.constant 0 : index
    %2 = vector.load %arg2[%c0_1, %c0_2] : memref<32x32xbf16, #tpu.memory_space<vmem>>, vector<32x32xbf16>
    %cst = arith.constant dense<0.000000e+00> : vector<8x32xf32>
    %3 = tpu.matmul %1, %2, %cst {dimension_numbers = #tpu.dot_dimension_numbers<[1], [0], [0], [1], [0, 0, 1, 1], [], []>} : vector<8x32xbf16>, vector<32x32xbf16>, vector<8x32xf32> -> vector<8x32xf32>
    %c0_3 = arith.constant 0 : index
    %c0_4 = arith.constant 0 : index
    %4 = vector.load %arg3[%c0_3, %c0_4] : memref<1x32xf32, #tpu.memory_space<vmem>>, vector<1x32xf32>
    %5 = vector.broadcast %4 : vector<1x32xf32> to vector<8x32xf32>
    %6 = arith.addf %3, %5 : vector<8x32xf32>
    %cst_5 = arith.constant 0.000000e+00 : f32
    %7 = vector.broadcast %cst_5 : f32 to vector<8x32xf32>
    %8 = arith.maximumf %6, %7 : vector<8x32xf32>
    %9 = arith.truncf %8 : vector<8x32xf32> to vector<8x32xbf16>
    %c0_6 = arith.constant 0 : index
    %c0_7 = arith.constant 0 : index
    %10 = vector.load %arg4[%c0_6, %c0_7] : memref<32x16xbf16, #tpu.memory_space<vmem>>, vector<32x16xbf16>
    %cst_8 = arith.constant dense<0.000000e+00> : vector<8x16xf32>
    %11 = tpu.matmul %9, %10, %cst_8 {dimension_numbers = #tpu.dot_dimension_numbers<[1], [0], [0], [1], [0, 0, 1, 1], [], []>} : vector<8x32xbf16>, vector<32x16xbf16>, vector<8x16xf32> -> vector<8x16xf32>
    %c0_9 = arith.constant 0 : index
    %c0_10 = arith.constant 0 : index
    %12 = vector.load %arg5[%c0_9, %c0_10] : memref<1x16xf32, #tpu.memory_space<vmem>>, vector<1x16xf32>
    %13 = vector.broadcast %12 : vector<1x16xf32> to vector<8x16xf32>
    %14 = arith.addf %11, %13 : vector<8x16xf32>
    %cst_11 = arith.constant 0.000000e+00 : f32
    %15 = vector.broadcast %cst_11 : f32 to vector<8x16xf32>
    %16 = arith.maximumf %14, %15 : vector<8x16xf32>
    %c0_12 = arith.constant 0 : index
    %c0_13 = arith.constant 0 : index
    %17 = vector.load %arg6[%c0_12, %c0_13] : memref<1x16xbf16, #tpu.memory_space<vmem>>, vector<1x16xbf16>
    %18 = arith.truncf %16 : vector<8x16xf32> to vector<8x16xbf16>
    %cst_14 = arith.constant dense<0.000000e+00> : vector<1x8xf32>
    %19 = tpu.matmul %17, %18, %cst_14 {dimension_numbers = #tpu.dot_dimension_numbers<[1], [1], [0], [0], [0, 0, 1, 0], [], []>} : vector<1x16xbf16>, vector<8x16xbf16>, vector<1x8xf32> -> vector<1x8xf32>
    %c0_15 = arith.constant 0 : index
    %20 = memref.load %arg7[%c0_15] : memref<1xf32, #tpu.memory_space<smem>>
    %21 = vector.broadcast %20 : f32 to vector<1x8xf32>
    %22 = arith.addf %19, %21 : vector<1x8xf32>
    %23 = arith.negf %22 : vector<1x8xf32>
    %24 = math.exp %23 : vector<1x8xf32>
    %cst_16 = arith.constant 1.000000e+00 : f32
    %25 = vector.broadcast %cst_16 : f32 to vector<1x8xf32>
    %26 = arith.addf %25, %24 : vector<1x8xf32>
    %27 = arith.divf %25, %26 : vector<1x8xf32>
    %c0_17 = arith.constant 0 : index
    %c0_18 = arith.constant 0 : index
    %28 = vector.load %arg8[%c0_17, %c0_18] : memref<1x8xf32, #tpu.memory_space<vmem>>, vector<1x8xf32>
    tpu.vector_store %arg8[%c0_17, %c0_18], %27 {strides = array<i32>} : memref<1x8xf32, #tpu.memory_space<vmem>>, vector<1x8xf32>,
    return
  }
  func.func @transform_0(%arg0: i32) -> (i32, i32) {
    %c0_i32 = arith.constant 0 : i32
    %c0_i32_0 = arith.constant 0 : i32
    return %arg0, %c0_i32 : i32, i32
  }
  func.func @transform_1(%arg0: i32) -> (i32, i32) {
    %c0_i32 = arith.constant 0 : i32
    %c0_i32_0 = arith.constant 0 : i32
    %c0_i32_1 = arith.constant 0 : i32
    return %c0_i32, %c0_i32_0 : i32, i32
  }
  func.func @transform_2(%arg0: i32) -> (i32, i32) {
    %c0_i32 = arith.constant 0 : i32
    %c0_i32_0 = arith.constant 0 : i32
    %c0_i32_1 = arith.constant 0 : i32
    return %c0_i32, %c0_i32_0 : i32, i32
  }
  func.func @transform_3(%arg0: i32) -> (i32, i32) {
    %c0_i32 = arith.constant 0 : i32
    %c0_i32_0 = arith.constant 0 : i32
    %c0_i32_1 = arith.constant 0 : i32
    return %c0_i32, %c0_i32_0 : i32, i32
  }
  func.func @transform_4(%arg0: i32) -> (i32, i32) {
    %c0_i32 = arith.constant 0 : i32
    %c0_i32_0 = arith.constant 0 : i32
    %c0_i32_1 = arith.constant 0 : i32
    return %c0_i32, %c0_i32_0 : i32, i32
  }
  func.func @transform_5(%arg0: i32) -> (i32, i32) {
    %c0_i32 = arith.constant 0 : i32
    %c0_i32_0 = arith.constant 0 : i32
    %c0_i32_1 = arith.constant 0 : i32
    return %c0_i32, %c0_i32_0 : i32, i32
  }
  func.func @transform_6(%arg0: i32) -> i32 {
    %c0_i32 = arith.constant 0 : i32
    %c0_i32_0 = arith.constant 0 : i32
    return %c0_i32 : i32
  }
  func.func @transform_7(%arg0: i32) -> (i32, i32) {
    %c0_i32 = arith.constant 0 : i32
    %c0_i32_0 = arith.constant 0 : i32
    return %c0_i32, %arg0 : i32, i32
  }
}

</mosaic_0001>

<llo_original>
// kernel: tpu_custom_call.1
$region0: #{tpu_custom_call.1}
  #allocation0 [shape = 'u32[]', space=smem, size = 0x4, offset = 0x4, fixed_abs, tag = 'smem constant byte address 0x4 - core index']
  #allocation1 [shape = 'u32[72,128]{1,0:T(1,128)}', space=vmem, size = 0x9000, scoped, tag = 'internal scratch']
  #allocation2 [shape = 'f32[1]{0:T(128)S(6)}', space=smem, size = 0x200, scoped, tag = 'scoped memory for tpu_custom_call.1']
  %s0 = inlined_call_operand.vmem [shape: f32[8,32], index: 0, kind: input, shape index: {}]
  %s1 = inlined_call_operand.vmem [shape: bf16[32,32], index: 1, kind: input, shape index: {}]
  %s2 = inlined_call_operand.vmem [shape: f32[1,32], index: 2, kind: input, shape index: {}]
  %s3 = inlined_call_operand.vmem [shape: bf16[32,16], index: 3, kind: input, shape index: {}]
  %s4 = inlined_call_operand.vmem [shape: f32[1,16], index: 4, kind: input, shape index: {}]
  %s5 = inlined_call_operand.vmem [shape: bf16[1,16], index: 5, kind: input, shape index: {}]
  %s6 = inlined_call_operand.<no memory space> [shape: f32[1], index: 6, kind: input, shape index: {}]
  %s7 = inlined_call_operand.hbm [shape: f32[1,8], index: 7, kind: output, shape index: {}]
  %s8 = sld [smem:[#allocation0]]
  $region38: #{tpu_custom_call.1} parent=0
    _
  %s10 = ssub.s32 1, %s8
  %s11 = scalar_select 0, %s10, %s8
  %12 = sst [smem:[#allocation2]] %s6
  $region1: #{tpu_custom_call.1} parent=0
    #allocation3 [shape = 'u8[512]{0}', space=vmem, size = 0x400, scoped, tag = 'output window, operand 0, single buffered']
    #allocation4 [shape = 's32[1]{0}', space=sflag, size = 0x4, scoped, tag = 'scoped memory for tpu_custom_call.1']
    %13 = vsyncpa [#allocation4], 0
    // Predicated region
    $region2: #{tpu_custom_call.1} parent=1 // pred_check
      _
    $region3: #{tpu_custom_call.1} parent=1 // pred_check_branch
      %15 = sbr.rel (0) target = $region5
    $region4: #{tpu_custom_call.1} parent=1 // pred_region
      _
    $region5: #{tpu_custom_call.1} parent=1 // pred_fallthru
      _
    // Predicated region
    $region6: #{tpu_custom_call.1} parent=1 // pred_check
      _
    $region7: #{tpu_custom_call.1} parent=1 // pred_check_branch
      %17 = sbr.rel (0) target = $region9
    $region8: #{tpu_custom_call.1} parent=1 // pred_region
      _
    $region9: #{tpu_custom_call.1} parent=1 // pred_fallthru
      _
    // Predicated region
    $region10: #{tpu_custom_call.1} parent=1 // pred_check
      _
    $region11: #{tpu_custom_call.1} parent=1 // pred_check_branch
      %19 = sbr.rel (0) target = $region13
    $region12: #{tpu_custom_call.1} parent=1 // pred_region
      _
    $region13: #{tpu_custom_call.1} parent=1 // pred_fallthru
      _
    // Predicated region
    $region14: #{tpu_custom_call.1} parent=1 // pred_check
      _
    $region15: #{tpu_custom_call.1} parent=1 // pred_check_branch
      %21 = sbr.rel (0) target = $region17
    $region16: #{tpu_custom_call.1} parent=1 // pred_region
      _
    $region17: #{tpu_custom_call.1} parent=1 // pred_fallthru
      _
    // Predicated region
    $region18: #{tpu_custom_call.1} parent=1 // pred_check
      _
    $region19: #{tpu_custom_call.1} parent=1 // pred_check_branch
      %23 = sbr.rel (0) target = $region21
    $region20: #{tpu_custom_call.1} parent=1 // pred_region
      _
    $region21: #{tpu_custom_call.1} parent=1 // pred_fallthru
      _
    // Predicated region
    $region22: #{tpu_custom_call.1} parent=1 // pred_check
      _
    $region23: #{tpu_custom_call.1} parent=1 // pred_check_branch
      %25 = sbr.rel (0) target = $region25
    $region24: #{tpu_custom_call.1} parent=1 // pred_region
      _
    $region25: #{tpu_custom_call.1} parent=1 // pred_fallthru
      _
    // Predicated region
    $region26: #{tpu_custom_call.1} parent=1 // pred_check
      _
    $region27: #{tpu_custom_call.1} parent=1 // pred_check_branch
      %27 = sbr.rel (0) target = $region29
    $region28: #{tpu_custom_call.1} parent=1 // pred_region
      _
    $region29: #{tpu_custom_call.1} parent=1 // pred_fallthru
      _
    %v29 = vld [vmem:[%s0] sm:$0xff]
    %v30 = vpack.c.bf16 %v29, %v29
    %v31 = vld [vmem:[%s1] sm:$0xf]
    %v32 = vld [vmem:[%s1 + $0x4] sm:$0xf]
    %v33 = vld [vmem:[%s1 + $0x8] sm:$0xf]
    %v34 = vld [vmem:[%s1 + $0xc] sm:$0xf]
    %v35 = vld [vmem:[%s2] sm:$0x1]
    %v37 = vperm.slane %v35, 0
    %v43 = vunpack.c.l.b16 %v31
    %v44 = vunpack.c.l.b16 %v32
    %v45 = vunpack.c.l.b16 %v33
    %v46 = vunpack.c.l.b16 %v34
    %v47 = vpack.c.b16 %v44, %v43
    %v48 = vpack.c.b16 %v46, %v45
    %vm51 = vcmask 261120
    %v53 = vsel %vm51, %v30, 0
    %55 = vmatpush.bf16.msra.mxu0 0
    %56 = vmatpush.bf16.msra.mxu0 0
    %57 = vmatpush.bf16.msra.mxu0 0
    %58 = vmatpush.bf16.msra.mxu0 0
    %59 = vmatpush.bf16.msra.mxu0 0
    %60 = vmatpush.bf16.msra.mxu0 0
    %61 = vmatpush.bf16.msra.mxu0 %v48
    %62 = vmatpush.bf16.msra.mxu0 %v47
    %63 = vmatmul.bf16.gmra.mxu0 %v53
    %v64 = vpop.f32.mrf.mxu0
    %v65 = vadd.f32 %v37, %v64
    %v66 = vpop.f32.mrf.mxu0
    %67 = vdwg.mxu0
    %v68 = vmax.f32 %v65, 0.0
    %v69 = vpack.c.bf16 %v68, %v68
    %v70 = vld [vmem:[%s3] sm:$0xf]
    %v71 = vld [vmem:[%s3 + $0x4] sm:$0xf]
    %v72 = vld [vmem:[%s3 + $0x8] sm:$0xf]
    %v73 = vld [vmem:[%s3 + $0xc] sm:$0xf]
    %v74 = vld [vmem:[%s4] sm:$0x1]
    %v76 = vperm.slane %v74, 0
    %v82 = vunpack.c.l.b16 %v70
    %v83 = vunpack.c.l.b16 %v71
    %v84 = vunpack.c.l.b16 %v72
    %v85 = vunpack.c.l.b16 %v73
    %v86 = vpack.c.b16 %v83, %v82
    %v87 = vpack.c.b16 %v85, %v84
    %v91 = vsel %vm51, %v69, 0
    %93 = vmatpush.bf16.msra.mxu0 0
    %94 = vmatpush.bf16.msra.mxu0 0
    %95 = vmatpush.bf16.msra.mxu0 0
    %96 = vmatpush.bf16.msra.mxu0 0
    %97 = vmatpush.bf16.msra.mxu0 0
    %98 = vmatpush.bf16.msra.mxu0 0
    %99 = vmatpush.bf16.msra.mxu0 %v87
    %100 = vmatpush.bf16.msra.mxu0 %v86
    %101 = vmatmul.bf16.gmra.mxu0 %v91
    %v102 = vpop.f32.mrf.mxu0
    %v103 = vadd.f32 %v76, %v102
    %v104 = vpop.f32.mrf.mxu0
    %105 = vdwg.mxu0
    %v106 = vmax.f32 %v103, 0.0
    %v107 = vld [vmem:[%s5] sm:$0x1]
    %v108 = vpack.c.bf16 %v106, %v106
    %s109 = sld [smem:[#allocation2]]
    %v110 = vstv %s109
    %vm111 = vcmask 130048
    %v113 = vsel %vm111, %v107, 0
    %v116 = vsel %vm111, %v108, 0
    %118 = vmatpush.bf16.xpose.msra.mxu0 0
    %119 = vmatpush.bf16.xpose.msra.mxu0 0
    %120 = vmatpush.bf16.xpose.msra.mxu0 0
    %121 = vmatpush.bf16.xpose.msra.mxu0 0
    %122 = vmatpush.bf16.xpose.msra.mxu0 0
    %123 = vmatpush.bf16.xpose.msra.mxu0 0
    %124 = vmatpush.bf16.xpose.msra.mxu0 0
    %125 = vmatpush.bf16.xpose.msra.mxu0 %v116
    %126 = vmatmul.bf16.gmra.mxu0 %v113
    %v127 = vpop.f32.mrf.mxu0
    %v128 = vadd.f32 %v110, %v127
    %v129 = vpop.f32.mrf.mxu0
    %130 = vdwg.mxu0
    %v131 = vxor.u32 %v128, 2147483648
    %v132 = vmul.f32 %v131, 1.442695
    %v133 = vpow.pop %v132
    %v134 = vadd.f32 %v133, 1.0
    %v135 = vrcp.pop %v134
    %v136 = vmul.f32 %v134, %v135
    %v137 = vsub.f32 1.0, %v136
    %v138 = vmul.f32 %v135, %v137
    %v139 = vadd.f32 %v135, %v138
    %vm140 = vweird.f32 %v134
    %vm141 = vweird.f32 %v135
    %vm142 = vmor %vm140, %vm141
    %v143 = vsel %vm142, %v135, %v139
    %v144 = vand.u32 2147483647, %v134
    %vm145 = vcmp.eq.f32.partialorder %v144, 8.507059e+37
    %v146 = vand.u32 %v134, 2147483648
    %v147 = vor.u32 1.1754944e-38, %v146
    %v148 = vsel %vm145, %v147, %v143
    %v149 = vmul.f32 1.0, %v148
    %vm150 = vcmask 57344
    %151 = vst.msk [vmem:[#allocation3] sm:$0x1] %vm150, %v149
    // Predicated region
    $region30: #{tpu_custom_call.1} parent=1 // pred_check
      _
    $region31: #{tpu_custom_call.1} parent=1 // pred_check_branch
      %153 = sbr.rel (0) target = $region33
    $region32: #{tpu_custom_call.1} parent=1 // pred_region
      %155 = vsyncadd [#allocation4], 0
      %s157 = sshll.u32 [#allocation3], 4
      %s158 = int_to_ptr.vmem [resolvable:$true] %s157
      %s159 = sshll.u32 %s7, 4
      %s160 = int_to_ptr.hbm [resolvable:$true] %s159
      %162 = dma.vmem_to_hbm [thread:$0]  %s158, 16, %s160, [#allocation4]
    $region33: #{tpu_custom_call.1} parent=1 // pred_fallthru
      _
    // Predicated region
    $region34: #{tpu_custom_call.1} parent=1 // pred_check
      _
    $region35: #{tpu_custom_call.1} parent=1 // pred_check_branch
      %164 = sbr.rel (0) target = $region37
    $region36: #{tpu_custom_call.1} parent=1 // pred_region
      %166 = dma.done [#allocation4], 16
    $region37: #{tpu_custom_call.1} parent=1 // pred_fallthru
      _
    %167 = vsyncpa [#allocation4], 1

// kernel: tpu_custom_call.1
$region0: #{tpu_custom_call.1}
  #allocation0 [shape = 'u32[]', space=smem, size = 0x4, offset = 0x4, fixed_abs, tag = 'smem constant byte address 0x4 - core index']
  #allocation1 [shape = 'u32[72,128]{1,0:T(1,128)}', space=vmem, size = 0x9000, scoped, tag = 'internal scratch']
  #allocation2 [shape = 'f32[1]{0:T(128)S(6)}', space=smem, size = 0x200, scoped, tag = 'scoped memory for tpu_custom_call.1']
  %s0 = inlined_call_operand.vmem [shape: f32[8,32], index: 0, kind: input, shape index: {}]
  %s1 = inlined_call_operand.vmem [shape: bf16[32,32], index: 1, kind: input, shape index: {}]
  %s2 = inlined_call_operand.vmem [shape: f32[1,32], index: 2, kind: input, shape index: {}]
  %s3 = inlined_call_operand.vmem [shape: bf16[32,16], index: 3, kind: input, shape index: {}]
  %s4 = inlined_call_operand.vmem [shape: f32[1,16], index: 4, kind: input, shape index: {}]
  %s5 = inlined_call_operand.vmem [shape: bf16[1,16], index: 5, kind: input, shape index: {}]
  %s6 = inlined_call_operand.<no memory space> [shape: f32[1], index: 6, kind: input, shape index: {}]
  %s7 = inlined_call_operand.hbm [shape: f32[1,8], index: 7, kind: output, shape index: {}]
  %s8 = sld [smem:[#allocation0]]
  $region38: #{tpu_custom_call.1} parent=0
    _
  %s10 = ssub.s32 1, %s8
  %s11 = scalar_select 0, %s10, %s8
  %12 = sst [smem:[#allocation2]] %s6
  $region1: #{tpu_custom_call.1} parent=0
    #allocation3 [shape = 'u8[512]{0}', space=vmem, size = 0x400, scoped, tag = 'output window, operand 0, single buffered']
    #allocation4 [shape = 's32[1]{0}', space=sflag, size = 0x4, scoped, tag = 'scoped memory for tpu_custom_call.1']
    %13 = vsyncpa [#allocation4], 0
    // Predicated region
    $region2: #{tpu_custom_call.1} parent=1 // pred_check
      _
    $region3: #{tpu_custom_call.1} parent=1 // pred_check_branch
      %15 = sbr.rel (0) target = $region5
    $region4: #{tpu_custom_call.1} parent=1 // pred_region
      _
    $region5: #{tpu_custom_call.1} parent=1 // pred_fallthru
      _
    // Predicated region
    $region6: #{tpu_custom_call.1} parent=1 // pred_check
      _
    $region7: #{tpu_custom_call.1} parent=1 // pred_check_branch
      %17 = sbr.rel (0) target = $region9
    $region8: #{tpu_custom_call.1} parent=1 // pred_region
      _
    $region9: #{tpu_custom_call.1} parent=1 // pred_fallthru
      _
    // Predicated region
    $region10: #{tpu_custom_call.1} parent=1 // pred_check
      _
    $region11: #{tpu_custom_call.1} parent=1 // pred_check_branch
      %19 = sbr.rel (0) target = $region13
    $region12: #{tpu_custom_call.1} parent=1 // pred_region
      _
    $region13: #{tpu_custom_call.1} parent=1 // pred_fallthru
      _
    // Predicated region
    $region14: #{tpu_custom_call.1} parent=1 // pred_check
      _
    $region15: #{tpu_custom_call.1} parent=1 // pred_check_branch
      %21 = sbr.rel (0) target = $region17
    $region16: #{tpu_custom_call.1} parent=1 // pred_region
      _
    $region17: #{tpu_custom_call.1} parent=1 // pred_fallthru
      _
    // Predicated region
    $region18: #{tpu_custom_call.1} parent=1 // pred_check
      _
    $region19: #{tpu_custom_call.1} parent=1 // pred_check_branch
      %23 = sbr.rel (0) target = $region21
    $region20: #{tpu_custom_call.1} parent=1 // pred_region
      _
    $region21: #{tpu_custom_call.1} parent=1 // pred_fallthru
      _
    // Predicated region
    $region22: #{tpu_custom_call.1} parent=1 // pred_check
      _
    $region23: #{tpu_custom_call.1} parent=1 // pred_check_branch
      %25 = sbr.rel (0) target = $region25
    $region24: #{tpu_custom_call.1} parent=1 // pred_region
      _
    $region25: #{tpu_custom_call.1} parent=1 // pred_fallthru
      _
    // Predicated region
    $region26: #{tpu_custom_call.1} parent=1 // pred_check
      _
    $region27: #{tpu_custom_call.1} parent=1 // pred_check_branch
      %27 = sbr.rel (0) target = $region29
    $region28: #{tpu_custom_call.1} parent=1 // pred_region
      _
    $region29: #{tpu_custom_call.1} parent=1 // pred_fallthru
      _
    %v29 = vld [vmem:[%s0] sm:$0xff]
    %v30 = vpack.c.bf16 %v29, %v29
    %v31 = vld [vmem:[%s1] sm:$0xf]
    %v32 = vld [vmem:[%s1 + $0x4] sm:$0xf]
    %v33 = vld [vmem:[%s1 + $0x8] sm:$0xf]
    %v34 = vld [vmem:[%s1 + $0xc] sm:$0xf]
    %v35 = vld [vmem:[%s2] sm:$0x1]
    %v37 = vperm.slane %v35, 0
    %v43 = vunpack.c.l.b16 %v31
    %v44 = vunpack.c.l.b16 %v32
    %v45 = vunpack.c.l.b16 %v33
    %v46 = vunpack.c.l.b16 %v34
    %v47 = vpack.c.b16 %v44, %v43
    %v48 = vpack.c.b16 %v46, %v45
    %vm51 = vcmask 261120
    %v53 = vsel %vm51, %v30, 0
    %55 = vmatpush.bf16.msra.mxu0 0
    %56 = vmatpush.bf16.msra.mxu0 0
    %57 = vmatpush.bf16.msra.mxu0 0
    %58 = vmatpush.bf16.msra.mxu0 0
    %59 = vmatpush.bf16.msra.mxu0 0
    %60 = vmatpush.bf16.msra.mxu0 0
    %61 = vmatpush.bf16.msra.mxu0 %v48
    %62 = vmatpush.bf16.msra.mxu0 %v47
    %63 = vmatmul.bf16.gmra.mxu0 %v53
    %v64 = vpop.f32.mrf.mxu0
    %v65 = vadd.f32 %v37, %v64
    %v66 = vpop.f32.mrf.mxu0
    %67 = vdwg.mxu0
    %v68 = vmax.f32 %v65, 0.0
    %v69 = vpack.c.bf16 %v68, %v68
    %v70 = vld [vmem:[%s3] sm:$0xf]
    %v71 = vld [vmem:[%s3 + $0x4] sm:$0xf]
    %v72 = vld [vmem:[%s3 + $0x8] sm:$0xf]
    %v73 = vld [vmem:[%s3 + $0xc] sm:$0xf]
    %v74 = vld [vmem:[%s4] sm:$0x1]
    %v76 = vperm.slane %v74, 0
    %v82 = vunpack.c.l.b16 %v70
    %v83 = vunpack.c.l.b16 %v71
    %v84 = vunpack.c.l.b16 %v72
    %v85 = vunpack.c.l.b16 %v73
    %v86 = vpack.c.b16 %v83, %v82
    %v87 = vpack.c.b16 %v85, %v84
    %v91 = vsel %vm51, %v69, 0
    %93 = vmatpush.bf16.msra.mxu0 0
    %94 = vmatpush.bf16.msra.mxu0 0
    %95 = vmatpush.bf16.msra.mxu0 0
    %96 = vmatpush.bf16.msra.mxu0 0
    %97 = vmatpush.bf16.msra.mxu0 0
    %98 = vmatpush.bf16.msra.mxu0 0
    %99 = vmatpush.bf16.msra.mxu0 %v87
    %100 = vmatpush.bf16.msra.mxu0 %v86
    %101 = vmatmul.bf16.gmra.mxu0 %v91
    %v102 = vpop.f32.mrf.mxu0
    %v103 = vadd.f32 %v76, %v102
    %v104 = vpop.f32.mrf.mxu0
    %105 = vdwg.mxu0
    %v106 = vmax.f32 %v103, 0.0
    %v107 = vld [vmem:[%s5] sm:$0x1]
    %v108 = vpack.c.bf16 %v106, %v106
    %s109 = sld [smem:[#allocation2]]
    %v110 = vstv %s109
    %vm111 = vcmask 130048
    %v113 = vsel %vm111, %v107, 0
    %v116 = vsel %vm111, %v108, 0
    %118 = vmatpush.bf16.xpose.msra.mxu0 0
    %119 = vmatpush.bf16.xpose.msra.mxu0 0
    %120 = vmatpush.bf16.xpose.msra.mxu0 0
    %121 = vmatpush.bf16.xpose.msra.mxu0 0
    %122 = vmatpush.bf16.xpose.msra.mxu0 0
    %123 = vmatpush.bf16.xpose.msra.mxu0 0
    %124 = vmatpush.bf16.xpose.msra.mxu0 0
    %125 = vmatpush.bf16.xpose.msra.mxu0 %v116
    %126 = vmatmul.bf16.gmra.mxu0 %v113
    %v127 = vpop.f32.mrf.mxu0
    %v128 = vadd.f32 %v110, %v127
    %v129 = vpop.f32.mrf.mxu0
    %130 = vdwg.mxu0
    %v131 = vxor.u32 %v128, 2147483648
    %v132 = vmul.f32 %v131, 1.442695
    %v133 = vpow.pop %v132
    %v134 = vadd.f32 %v133, 1.0
    %v135 = vrcp.pop %v134
    %v136 = vmul.f32 %v134, %v135
    %v137 = vsub.f32 1.0, %v136
    %v138 = vmul.f32 %v135, %v137
    %v139 = vadd.f32 %v135, %v138
    %vm140 = vweird.f32 %v134
    %vm141 = vweird.f32 %v135
    %vm142 = vmor %vm140, %vm141
    %v143 = vsel %vm142, %v135, %v139
    %v144 = vand.u32 2147483647, %v134
    %vm145 = vcmp.eq.f32.partialorder %v144, 8.507059e+37
    %v146 = vand.u32 %v134, 2147483648
    %v147 = vor.u32 1.1754944e-38, %v146
    %v148 = vsel %vm145, %v147, %v143
    %v149 = vmul.f32 1.0, %v148
    %vm150 = vcmask 57344
    %151 = vst.msk [vmem:[#allocation3] sm:$0x1] %vm150, %v149
    // Predicated region
    $region30: #{tpu_custom_call.1} parent=1 // pred_check
      _
    $region31: #{tpu_custom_call.1} parent=1 // pred_check_branch
      %153 = sbr.rel (0) target = $region33
    $region32: #{tpu_custom_call.1} parent=1 // pred_region
      %155 = vsyncadd [#allocation4], 0
      %s157 = sshll.u32 [#allocation3], 4
      %s158 = int_to_ptr.vmem [resolvable:$true] %s157
      %s159 = sshll.u32 %s7, 4
      %s160 = int_to_ptr.hbm [resolvable:$true] %s159
      %162 = dma.vmem_to_hbm [thread:$0]  %s158, 16, %s160, [#allocation4]
    $region33: #{tpu_custom_call.1} parent=1 // pred_fallthru
      _
    // Predicated region
    $region34: #{tpu_custom_call.1} parent=1 // pred_check
      _
    $region35: #{tpu_custom_call.1} parent=1 // pred_check_branch
      %164 = sbr.rel (0) target = $region37
    $region36: #{tpu_custom_call.1} parent=1 // pred_region
      %166 = dma.done [#allocation4], 16
    $region37: #{tpu_custom_call.1} parent=1 // pred_fallthru
      _
    %167 = vsyncpa [#allocation4], 1

</llo_original>
